<compile_context>
chip_gen: v7x
topology: tpu7x:2x2x1
jax: 0.10.0
libtpu: 0.0.40
codegen_flags: <defaults>
</compile_context>

<pallas_src>
import functools

import numpy as np
import jax
import jax.numpy as jnp
from jax import lax
from jax.experimental import pallas as pl
from jax.experimental.pallas import tpu as pltpu

T2 = 0.05          # temperature buffer value from the module
EPS = 1e-5         # `eps` from loss.py
_NEG_BIG = -1e9    # exp(_NEG_BIG) == 0 in f32; kills the diagonal exactly


def _contrastive_kernel(lab2_ref, x_ref, out_ref, rnorm_sc, s_sc, *,
                        inv_t, inv_num_r, inv_num_nr, tn):
    """One feature (text or image); grid axis = column tiles of the BxB sim."""
    j = pl.program_id(0)
    nj = pl.num_programs(0)
    b = x_ref.shape[0]

    # ---- init (first column tile): row norms + accumulator reset ------------
    @pl.when(j == 0)
    def _():
        x0 = x_ref[...].astype(jnp.float32)                      # (B, D)
        sumsq = jnp.sum(x0 * x0, axis=1, keepdims=True)          # (B, 1)
        rnorm_sc[...] = lax.rsqrt(jnp.maximum(sumsq, 1e-24))     # 1/max(||x||,1e-12)
        s_sc[...] = jnp.zeros_like(s_sc)

    # ---- one (B, TN) column slab of the similarity matrix -------------------
    off = pl.multiple_of(j * tn, tn)
    x_tile = x_ref[pl.ds(off, tn), :].astype(jnp.float32)        # (TN, D) raw
    rn_tile = rnorm_sc[pl.ds(off, tn), :]                        # (TN, 1)
    rhs = x_tile * rn_tile                                       # unit-norm columns

    # raw_rows @ unit_cols^T on the MXU (contract dim 1 of both: no transpose copy).
    z = lax.dot_general(x_ref[...].astype(jnp.float32), rhs,
                        (((1,), (1,)), ((), ())),
                        preferred_element_type=jnp.float32,
                        precision=lax.Precision.HIGHEST)         # (B, TN)
    # missing row normalization + temperature folded into one (B,1) column scale
    z = z * (rnorm_sc[...] * inv_t)                              # = cos_sim / T

    # exclude the diagonal exactly before exponentiation
    row_ids = lax.broadcasted_iota(jnp.int32, (b, tn), 0)
    col_ids = lax.broadcasted_iota(jnp.int32, (b, tn), 1) + off
    e = jnp.exp(jnp.where(row_ids == col_ids, jnp.float32(_NEG_BIG), z))

    # same-class / other-class row sums as one small MXU matvec: e @ [l, 1-l]
    l_tile = lab2_ref[pl.ds(off, tn), :]                         # (TN, 2)
    s_sc[...] += lax.dot_general(e, l_tile, (((1,), (0,)), ((), ())),
                                 preferred_element_type=jnp.float32,
                                 precision=lax.Precision.HIGHEST)

    # ---- finalize (last column tile): per-row weighted -log terms -----------
    @pl.when(j == nj - 1)
    def _():
        is_r = lab2_ref[:, 0:1] > 0.5                            # (B, 1) rumor?
        s_same = jnp.where(is_r, s_sc[:, 0:1], s_sc[:, 1:2])     # nominator
        s_all = s_sc[:, 0:1] + s_sc[:, 1:2]                      # denominator
        w = jnp.where(is_r, jnp.float32(inv_num_r), jnp.float32(inv_num_nr))
        out_ref[...] = -w * jnp.log(s_same / s_all + EPS)        # exact division


def _per_feature_loss(feat, lab2, *, num_r, num_nr, temperature, tn):
    B, D = feat.shape
    nj = B // tn
    kernel = functools.partial(
        _contrastive_kernel,
        inv_t=float(1.0 / temperature),
        # NOTE: matches the reference's implicit assumption num_r, num_nr > 0.
        inv_num_r=float(1.0 / num_r),
        inv_num_nr=float(1.0 / num_nr),
        tn=tn,
    )
    out = pl.pallas_call(
        kernel,
        out_shape=jax.ShapeDtypeStruct((B, 1), jnp.float32),
        grid_spec=pltpu.PrefetchScalarGridSpec(
            num_scalar_prefetch=0,
            grid=(nj,),                                          # column tiles
            in_specs=[
                pl.BlockSpec((B, 2), lambda j: (0, 0)),          # [l, 1-l], resident
                pl.BlockSpec((B, D), lambda j: (0, 0)),          # raw features, fetched once
            ],
            out_specs=pl.BlockSpec((B, 1), lambda j: (0, 0)),
            scratch_shapes=[
                pltpu.VMEM((B, 1), jnp.float32),                 # 1 / ||x_i||
                pltpu.VMEM((B, 2), jnp.float32),                 # [same-class, other-class] sums
            ],
        ),
        compiler_params=pltpu.CompilerParams(
            dimension_semantics=("arbitrary",),                  # reduction over tiles
            vmem_limit_bytes=56 * 1024 * 1024,                   # < v7x 64 MiB physical
        ),
    )(lab2, feat)
    # tiny (B,1) reduction in the wrapper keeps the epilogue off the kernel
    return jnp.sum(out)


def full_contrastive_loss(text, image, label, *, num_r, num_nr, temperature=T2):
    """text, image: (B, D); label: (B,) int 0/1 (1 == rumor). Returns scalar loss."""
    B, _ = text.shape
    lab = label.astype(jnp.float32).reshape(B, 1)
    lab2 = jnp.concatenate([lab, 1.0 - lab], axis=1)             # (B, 2), tiny

    # column-tile size: stream the BxB similarity in (B, TN) slabs
    tn = B
    for cand in (512, 256, 128):
        if B > cand and B % cand == 0:
            tn = cand
            break
    # TODO(synk): for B not divisible by 128/256/512 and B > 512, fall back to
    # the untiled path (tn = B); a ragged last tile is not handled here.

    loss_t = _per_feature_loss(text, lab2, num_r=num_r, num_nr=num_nr,
                               temperature=temperature, tn=tn)
    loss_i = _per_feature_loss(image, lab2, num_r=num_r, num_nr=num_nr,
                               temperature=temperature, tn=tn)
    return loss_t + loss_i


def _ref_loss(text, image, label, num_r, num_nr, temperature):
    """Pure numpy reference matching the PyTorch semantics."""
    text = np.asarray(text, np.float32)
    image = np.asarray(image, np.float32)
    label = np.asarray(label)

    def normalize(x, eps):
        n = np.linalg.norm(x, axis=1, keepdims=True)
        return x / np.maximum(n, eps)

    def cos(a, b):
        na = normalize(a, 1e-8)
        nb = normalize(b, 1e-8)
        return na @ nb.T

    def compute(feat):
        ft_r = feat[label == 1]
        ft_nr = feat[label == 0]
        s_rr = cos(ft_r, ft_r)
        s_nn = cos(ft_nr, ft_nr)
        s_rn = cos(ft_r, ft_nr)
        s_nr = cos(ft_nr, ft_r)
        mr = 1.0 - np.eye(num_r, dtype=np.float32)
        mn = 1.0 - np.eye(num_nr, dtype=np.float32)
        nom_r = np.sum(mr * np.exp(s_rr / temperature), axis=1)
        nom_n = np.sum(mn * np.exp(s_nn / temperature), axis=1)
        den_r = nom_r + np.sum(np.exp(s_rn / temperature), axis=1)
        den_n = nom_n + np.sum(np.exp(s_nr / temperature), axis=1)
        lr = np.sum(-np.log(nom_r / den_r + EPS)) / num_r
        ln = np.sum(-np.log(nom_n / den_n + EPS)) / num_nr
        return lr + ln

    tn_ = normalize(text, 1e-12)
    im = normalize(image, 1e-12)
    return compute(tn_) + compute(im)


if __name__ == "__main__":
    key = jax.random.PRNGKey(0)
    k1, k2 = jax.random.split(key)

    B, D = 8, 32
    text = jax.random.normal(k1, (B, D), dtype=jnp.float32)
    image = jax.random.normal(k2, (B, D), dtype=jnp.float32)
    # deterministic labels: 4 rumor (1), 4 non-rumor (0)
    label = jnp.array([1, 0, 1, 1, 0, 0, 1, 0], dtype=jnp.int32)
    num_r, num_nr = 4, 4

    loss = full_contrastive_loss(text, image, label, num_r=num_r, num_nr=num_nr)
    loss = jax.block_until_ready(loss)

    ref = _ref_loss(text, image, label, num_r, num_nr, T2)
    assert np.allclose(float(loss), float(ref), rtol=1e-4, atol=1e-4), (float(loss), float(ref))

    print("KERNEL_OK")
</pallas_src>

<mosaic_0001>
module attributes {stable_mosaic.version = 11 : i64} {
  func.func @_contrastive_kernel(%arg0: i32, %arg1: memref<8x2xf32, #tpu.memory_space<vmem>>, %arg2: memref<8x32xf32, #tpu.memory_space<vmem>>, %arg3: memref<8x1xf32, #tpu.memory_space<vmem>>, %arg4: memref<8x1xf32, #tpu.memory_space<vmem>>, %arg5: memref<8x2xf32, #tpu.memory_space<vmem>>) attributes {dimension_semantics = [#tpu.dimension_semantics<arbitrary>], iteration_bounds = array<i64: 1>, scalar_prefetch = 0 : i64, scratch_operands = 2 : i64, tpu.core_type = #tpu.core_type<tc>, window_params = [{pipeline_mode = #tpu.pipeline_mode<synchronous>, transform_indices = @transform_0, window_bounds = array<i64: 8, 2>}, {pipeline_mode = #tpu.pipeline_mode<synchronous>, transform_indices = @transform_1, window_bounds = array<i64: 8, 32>}, {pipeline_mode = #tpu.pipeline_mode<synchronous>, transform_indices = @transform_2, window_bounds = array<i64: 8, 1>}]} {
    %c0_i32 = arith.constant 0 : i32
    %0 = arith.cmpi eq, %arg0, %c0_i32 : i32
    %1 = arith.extui %0 : i1 to i32
    %c0_i32_0 = arith.constant 0 : i32
    %2 = arith.cmpi ne, %1, %c0_i32_0 : i32
    scf.if %2 {
      %c0_16 = arith.constant 0 : index
      %c0_17 = arith.constant 0 : index
      %35 = vector.load %arg2[%c0_16, %c0_17] : memref<8x32xf32, #tpu.memory_space<vmem>>, vector<8x32xf32>
      %36 = arith.mulf %35, %35 : vector<8x32xf32>
      %cst_18 = arith.constant dense<0.000000e+00> : vector<8xf32>
      %37 = vector.multi_reduction <add>, %36, %cst_18 [1] : vector<8x32xf32> to vector<8xf32>
      %38 = vector.shape_cast %37 : vector<8xf32> to vector<8x1xf32>
      %cst_19 = arith.constant 1.000000e-24 : f32
      %39 = vector.broadcast %cst_19 : f32 to vector<8x1xf32>
      %40 = arith.maximumf %38, %39 : vector<8x1xf32>
      %41 = math.rsqrt %40 : vector<8x1xf32>
      %c0_20 = arith.constant 0 : index
      %c0_21 = arith.constant 0 : index
      %42 = vector.load %arg4[%c0_20, %c0_21] : memref<8x1xf32, #tpu.memory_space<vmem>>, vector<8x1xf32>
      tpu.vector_store %arg4[%c0_20, %c0_21], %41 {strides = array<i32>} : memref<8x1xf32, #tpu.memory_space<vmem>>, vector<8x1xf32>,
      %cst_22 = arith.constant 0.000000e+00 : f32
      %43 = vector.broadcast %cst_22 : f32 to vector<8x2xf32>
      %c0_23 = arith.constant 0 : index
      %c0_24 = arith.constant 0 : index
      %44 = vector.load %arg5[%c0_23, %c0_24] : memref<8x2xf32, #tpu.memory_space<vmem>>, vector<8x2xf32>
      tpu.vector_store %arg5[%c0_23, %c0_24], %43 {strides = array<i32>} : memref<8x2xf32, #tpu.memory_space<vmem>>, vector<8x2xf32>,
    } else {
    }
    %c8_i32 = arith.constant 8 : i32
    %3 = arith.muli %arg0, %c8_i32 : i32
    %4 = tpu.assume_multiple %3, 8 : i32
    %5 = arith.index_cast %4 : i32 to index
    %c0 = arith.constant 0 : index
    %6 = vector.load %arg2[%5, %c0] : memref<8x32xf32, #tpu.memory_space<vmem>>, vector<8x32xf32>
    %7 = arith.index_cast %4 : i32 to index
    %c0_1 = arith.constant 0 : index
    %8 = vector.load %arg4[%7, %c0_1] : memref<8x1xf32, #tpu.memory_space<vmem>>, vector<8x1xf32>
    %9 = vector.broadcast %8 : vector<8x1xf32> to vector<8x32xf32>
    %10 = arith.mulf %6, %9 : vector<8x32xf32>
    %c0_2 = arith.constant 0 : index
    %c0_3 = arith.constant 0 : index
    %11 = vector.load %arg2[%c0_2, %c0_3] : memref<8x32xf32, #tpu.memory_space<vmem>>, vector<8x32xf32>
    %cst = arith.constant dense<0.000000e+00> : vector<8x8xf32>
    %12 = tpu.matmul %11, %10, %cst {dimension_numbers = #tpu.dot_dimension_numbers<[1], [1], [0], [0], [0, 0, 1, 0], [], []>, precision = #tpu.contract_precision<fp32>} : vector<8x32xf32>, vector<8x32xf32>, vector<8x8xf32> -> vector<8x8xf32>
    %c0_4 = arith.constant 0 : index
    %c0_5 = arith.constant 0 : index
    %13 = vector.load %arg4[%c0_4, %c0_5] : memref<8x1xf32, #tpu.memory_space<vmem>>, vector<8x1xf32>
    %cst_6 = arith.constant 2.000000e+01 : f32
    %14 = vector.broadcast %cst_6 : f32 to vector<8x1xf32>
    %15 = arith.mulf %13, %14 : vector<8x1xf32>
    %16 = vector.broadcast %15 : vector<8x1xf32> to vector<8x8xf32>
    %17 = arith.mulf %12, %16 : vector<8x8xf32>
    %18 = tpu.iota {dimensions = array<i32: 0>} : vector<8x8xi32>
    %19 = tpu.iota {dimensions = array<i32: 1>} : vector<8x8xi32>
    %20 = vector.broadcast %4 : i32 to vector<8x8xi32>
    %21 = arith.addi %19, %20 : vector<8x8xi32>
    %22 = arith.cmpi eq, %18, %21 : vector<8x8xi32>
    %cst_7 = arith.constant -1.000000e+09 : f32
    %23 = vector.broadcast %cst_7 : f32 to vector<8x8xf32>
    %24 = arith.select %22, %23, %17 : vector<8x8xi1>, vector<8x8xf32>
    %25 = math.exp %24 : vector<8x8xf32>
    %26 = arith.index_cast %4 : i32 to index
    %c0_8 = arith.constant 0 : index
    %27 = vector.load %arg1[%26, %c0_8] : memref<8x2xf32, #tpu.memory_space<vmem>>, vector<8x2xf32>
    %c0_9 = arith.constant 0 : index
    %c0_10 = arith.constant 0 : index
    %28 = vector.load %arg5[%c0_9, %c0_10] : memref<8x2xf32, #tpu.memory_space<vmem>>, vector<8x2xf32>
    %cst_11 = arith.constant dense<0.000000e+00> : vector<8x2xf32>
    %29 = tpu.matmul %25, %27, %cst_11 {dimension_numbers = #tpu.dot_dimension_numbers<[1], [0], [0], [1], [0, 0, 1, 1], [], []>, precision = #tpu.contract_precision<fp32>} : vector<8x8xf32>, vector<8x2xf32>, vector<8x2xf32> -> vector<8x2xf32>
    %30 = arith.addf %28, %29 : vector<8x2xf32>
    %c0_12 = arith.constant 0 : index
    %c0_13 = arith.constant 0 : index
    %31 = vector.load %arg5[%c0_12, %c0_13] : memref<8x2xf32, #tpu.memory_space<vmem>>, vector<8x2xf32>
    tpu.vector_store %arg5[%c0_12, %c0_13], %30 {strides = array<i32>} : memref<8x2xf32, #tpu.memory_space<vmem>>, vector<8x2xf32>,
    %c0_i32_14 = arith.constant 0 : i32
    %32 = arith.cmpi eq, %arg0, %c0_i32_14 : i32
    %33 = arith.extui %32 : i1 to i32
    %c0_i32_15 = arith.constant 0 : i32
    %34 = arith.cmpi ne, %33, %c0_i32_15 : i32
    scf.if %34 {
      %c0_16 = arith.constant 0 : index
      %c0_17 = arith.constant 0 : index
      %35 = vector.load %arg1[%c0_16, %c0_17] : memref<8x2xf32, #tpu.memory_space<vmem>>, vector<8x1xf32>
      %cst_18 = arith.constant 5.000000e-01 : f32
      %36 = vector.broadcast %cst_18 : f32 to vector<8x1xf32>
      %37 = arith.cmpf ogt, %35, %36 : vector<8x1xf32>
      %c0_19 = arith.constant 0 : index
      %c0_20 = arith.constant 0 : index
      %38 = vector.load %arg5[%c0_19, %c0_20] : memref<8x2xf32, #tpu.memory_space<vmem>>, vector<8x1xf32>
      %c0_21 = arith.constant 0 : index
      %c1 = arith.constant 1 : index
      %39 = vector.load %arg5[%c0_21, %c1] : memref<8x2xf32, #tpu.memory_space<vmem>>, vector<8x1xf32>
      %40 = arith.select %37, %38, %39 : vector<8x1xi1>, vector<8x1xf32>
      %c0_22 = arith.constant 0 : index
      %c0_23 = arith.constant 0 : index
      %41 = vector.load %arg5[%c0_22, %c0_23] : memref<8x2xf32, #tpu.memory_space<vmem>>, vector<8x1xf32>
      %c0_24 = arith.constant 0 : index
      %c1_25 = arith.constant 1 : index
      %42 = vector.load %arg5[%c0_24, %c1_25] : memref<8x2xf32, #tpu.memory_space<vmem>>, vector<8x1xf32>
      %43 = arith.addf %41, %42 : vector<8x1xf32>
      %cst_26 = arith.constant 2.500000e-01 : f32
      %cst_27 = arith.constant 2.500000e-01 : f32
      %44 = vector.broadcast %cst_26 : f32 to vector<8x1xf32>
      %45 = vector.broadcast %cst_27 : f32 to vector<8x1xf32>
      %46 = arith.select %37, %44, %45 : vector<8x1xi1>, vector<8x1xf32>
      %cst_28 = arith.constant 0.000000e+00 : f32
      %47 = vector.broadcast %cst_28 : f32 to vector<8x1xf32>
      %48 = arith.subf %47, %46 : vector<8x1xf32>
      %49 = arith.divf %40, %43 : vector<8x1xf32>
      %cst_29 = arith.constant 9.99999974E-6 : f32
      %50 = vector.broadcast %cst_29 : f32 to vector<8x1xf32>
      %51 = arith.addf %49, %50 : vector<8x1xf32>
      %52 = math.log %51 : vector<8x1xf32>
      %53 = arith.mulf %48, %52 : vector<8x1xf32>
      %c0_30 = arith.constant 0 : index
      %c0_31 = arith.constant 0 : index
      %54 = vector.load %arg3[%c0_30, %c0_31] : memref<8x1xf32, #tpu.memory_space<vmem>>, vector<8x1xf32>
      tpu.vector_store %arg3[%c0_30, %c0_31], %53 {strides = array<i32>} : memref<8x1xf32, #tpu.memory_space<vmem>>, vector<8x1xf32>,
    } else {
    }
    return
  }
  func.func @transform_0(%arg0: i32) -> (i32, i32) {
    %c0_i32 = arith.constant 0 : i32
    %c0_i32_0 = arith.constant 0 : i32
    %c0_i32_1 = arith.constant 0 : i32
    return %c0_i32, %c0_i32_0 : i32, i32
  }
  func.func @transform_1(%arg0: i32) -> (i32, i32) {
    %c0_i32 = arith.constant 0 : i32
    %c0_i32_0 = arith.constant 0 : i32
    %c0_i32_1 = arith.constant 0 : i32
    return %c0_i32, %c0_i32_0 : i32, i32
  }
  func.func @transform_2(%arg0: i32) -> (i32, i32) {
    %c0_i32 = arith.constant 0 : i32
    %c0_i32_0 = arith.constant 0 : i32
    %c0_i32_1 = arith.constant 0 : i32
    return %c0_i32, %c0_i32_0 : i32, i32
  }
}

</mosaic_0001>

<llo_original>
// kernel: tpu_custom_call.1
$region0: #{tpu_custom_call.1}
  #allocation0 [shape = 'u32[]', space=smem, size = 0x4, offset = 0x4, fixed_abs, tag = 'smem constant byte address 0x4 - core index']
  #allocation1 [shape = 'u32[144,128]{1,0:T(1,128)}', space=vmem, size = 0x12000, scoped, tag = 'internal scratch']
  #allocation2 [shape = 'f32[8,1]{1,0:T(8,128)}', space=vmem, size = 0x1000, scoped, tag = 'scratch operand']
  #allocation3 [shape = 'f32[8,2]{1,0:T(8,128)}', space=vmem, size = 0x1000, scoped, tag = 'scratch operand']
  %s0 = inlined_call_operand.vmem [shape: f32[8,2], index: 0, kind: input, shape index: {}]
  %s1 = inlined_call_operand.vmem [shape: f32[8,32], index: 1, kind: input, shape index: {}]
  %s2 = inlined_call_operand.vmem [shape: f32[8,1], index: 2, kind: output, shape index: {}]
  %s3 = sld [smem:[#allocation0]]
  $region26: #{tpu_custom_call.1} parent=0
    _
  %s5 = ssub.s32 1, %s3
  %s6 = scalar_select 0, %s5, %s3
  // Predicated region
  $region2: #{tpu_custom_call.1} parent=0 // pred_check
    _
  $region3: #{tpu_custom_call.1} parent=0 // pred_check_branch
    %8 = sbr.rel (0) target = $region5
  $region4: #{tpu_custom_call.1} parent=0 // pred_region
    _
  $region5: #{tpu_custom_call.1} parent=0 // pred_fallthru
    _
  // Predicated region
  $region6: #{tpu_custom_call.1} parent=0 // pred_check
    _
  $region7: #{tpu_custom_call.1} parent=0 // pred_check_branch
    %10 = sbr.rel (0) target = $region9
  $region8: #{tpu_custom_call.1} parent=0 // pred_region
    _
  $region9: #{tpu_custom_call.1} parent=0 // pred_fallthru
    _
  %p11 = scmp.eq.s32.totalorder 0, 0
  // Predicated region
  $region10: #{tpu_custom_call.1} parent=0 // pred_check
    %p12 = pneg %p11
  $region11: #{tpu_custom_call.1} parent=0 // pred_check_branch
    %14 = sbr.rel (%p12) target = $region13
  $region12: #{tpu_custom_call.1} parent=0 // pred_region
    %v15 = vld [vmem:[%s1] sm:$0xff]
    %v16 = vmul.f32 %v15, %v15
    %vm17 = vcmask 261120
    %v18 = vsel %vm17, %v16, 0.0
    %19 = vadd.xlane.f32.xlu0 %v18
    %v20 = vpop.xlane.xlu0 %19
    %v21 = vmax.f32 %v20, 1e-24
    %v22 = vrsqrt.pop %v21
    %vm23 = vcmask 7168
    %24 = vst.msk [vmem:[#allocation2] sm:$0xff] %vm23, %v22
    %vm25 = vcmask 15360
    %26 = vst.msk [vmem:[#allocation3] sm:$0xff] %vm25, 0.0
  $region13: #{tpu_custom_call.1} parent=0 // pred_fallthru
    _
  %s27 = smul.u32 0, 8
  %s28 = scalar_lea.vmem %s1, %s27
  %v29 = vld [vmem:[%s28] sm:$0xff]
  %s30 = scalar_lea.vmem [#allocation2], %s27
  %v31 = vld [vmem:[%s30] sm:$0xff]
  %33 = vset.pattern.permute.xlu0 0
  %34 = vperm.xlu0 %33, %v31
  %v35 = vpop.permute.xlu0 %34
  %v37 = vmul.f32 %v29, %v35
  %v38 = vld [vmem:[%s1] sm:$0xff]
  %vm39 = vcmask 261120
  %v41 = vsel %vm39, %v38, 0
  %v44 = vsel %vm39, %v37, 0
  %46 = vmatprep.subr.mxu0 0.0
  %v47 = vand.u32 %v44, 4294901760
  %48 = vmatpush1.xpose.msra.mxu0 %v47
  %49 = vmatprep.subr.mxu0 0.0
  %50 = vmatpush1.xpose.msra.mxu0 0.0
  %51 = vmatprep.subr.mxu0 0.0
  %52 = vmatpush1.xpose.msra.mxu0 0.0
  %53 = vmatprep.subr.mxu0 0.0
  %54 = vmatpush1.xpose.msra.mxu0 0.0
  %55 = vmatprep.subr.mxu0 0.0
  %56 = vmatpush1.xpose.msra.mxu0 0.0
  %57 = vmatprep.subr.mxu0 0.0
  %58 = vmatpush1.xpose.msra.mxu0 0.0
  %59 = vmatprep.subr.mxu0 0.0
  %60 = vmatpush1.xpose.msra.mxu0 0.0
  %61 = vmatprep.subr.mxu0 0.0
  %62 = vmatpush1.xpose.msra.mxu0 0.0
  %63 = vmatprep.subr.mxu0 0.0
  %64 = vmatpush1.xpose.msra.mxu0 0.0
  %65 = vmatprep.subr.mxu0 0.0
  %66 = vmatpush1.xpose.msra.mxu0 0.0
  %67 = vmatprep.subr.mxu0 0.0
  %68 = vmatpush1.xpose.msra.mxu0 0.0
  %69 = vmatprep.subr.mxu0 0.0
  %70 = vmatpush1.xpose.msra.mxu0 0.0
  %71 = vmatprep.subr.mxu0 0.0
  %72 = vmatpush1.xpose.msra.mxu0 0.0
  %73 = vmatprep.subr.mxu0 0.0
  %74 = vmatpush1.xpose.msra.mxu0 0.0
  %75 = vmatprep.subr.mxu0 0.0
  %76 = vmatpush1.xpose.msra.mxu0 0.0
  %77 = vmatprep.subr.mxu0 0.0
  %78 = vmatpush1.xpose.msra.mxu0 0.0
  %79 = vmatprep.subr.mxu0 0.0
  %80 = vmatpush1.xpose.msra.mxu0 0.0
  %81 = vmatprep.subr.mxu0 0.0
  %82 = vmatpush1.xpose.msra.mxu0 0.0
  %83 = vmatprep.subr.mxu0 0.0
  %84 = vmatpush1.xpose.msra.mxu0 0.0
  %85 = vmatprep.subr.mxu0 0.0
  %86 = vmatpush1.xpose.msra.mxu0 0.0
  %87 = vmatprep.subr.mxu0 0.0
  %88 = vmatpush1.xpose.msra.mxu0 0.0
  %89 = vmatprep.subr.mxu0 0.0
  %90 = vmatpush1.xpose.msra.mxu0 0.0
  %91 = vmatprep.subr.mxu0 0.0
  %92 = vmatpush1.xpose.msra.mxu0 0.0
  %93 = vmatprep.subr.mxu0 0.0
  %94 = vmatpush1.xpose.msra.mxu0 0.0
  %95 = vmatprep.subr.mxu0 0.0
  %96 = vmatpush1.xpose.msra.mxu0 0.0
  %97 = vmatprep.subr.mxu0 0.0
  %98 = vmatpush1.xpose.msra.mxu0 0.0
  %99 = vmatprep.subr.mxu0 0.0
  %100 = vmatpush1.xpose.msra.mxu0 0.0
  %101 = vmatprep.subr.mxu0 0.0
  %102 = vmatpush1.xpose.msra.mxu0 0.0
  %103 = vmatprep.subr.mxu0 0.0
  %104 = vmatpush1.xpose.msra.mxu0 0.0
  %105 = vmatprep.subr.mxu0 0.0
  %106 = vmatpush1.xpose.msra.mxu0 0.0
  %107 = vmatprep.subr.mxu0 0.0
  %108 = vmatpush1.xpose.msra.mxu0 0.0
  %109 = vmatprep.subr.mxu0 0.0
  %110 = vmatpush1.xpose.msra.mxu0 0.0
  %111 = vmatprep.mubr.f32.mxu0 0.0
  %v112 = vand.u32 %v41, 4294901760
  %v113 = vsub.f32 %v41, %v112
  %v114 = vand.u32 %v113, 4294901760
  %v115 = vsub.f32 %v113, %v114
  %v116 = vand.u32 %v115, 4294901760
  %117 = vmatmul.mubr.f32.gmra.mrb[0].mxu0 %v116
  %v118 = vpop.f32.mrb[0].mxu0
  %v119 = vadd.f32 0.0, %v118
  %v120 = vpop.f32.mrb[0].mxu0
  %121 = vdwg.mxu0
  %122 = vmatprep.subr.mxu0 0.0
  %v123 = vand.u32 %v44, 4294901760
  %v124 = vsub.f32 %v44, %v123
  %v125 = vand.u32 %v124, 4294901760
  %v126 = vsub.f32 %v124, %v125
  %v127 = vand.u32 %v126, 4294901760
  %128 = vmatpush1.xpose.msra.mxu0 %v127
  %129 = vmatprep.subr.mxu0 0.0
  %130 = vmatpush1.xpose.msra.mxu0 0.0
  %131 = vmatprep.subr.mxu0 0.0
  %132 = vmatpush1.xpose.msra.mxu0 0.0
  %133 = vmatprep.subr.mxu0 0.0
  %134 = vmatpush1.xpose.msra.mxu0 0.0
  %135 = vmatprep.subr.mxu0 0.0
  %136 = vmatpush1.xpose.msra.mxu0 0.0
  %137 = vmatprep.subr.mxu0 0.0
  %138 = vmatpush1.xpose.msra.mxu0 0.0
  %139 = vmatprep.subr.mxu0 0.0
  %140 = vmatpush1.xpose.msra.mxu0 0.0
  %141 = vmatprep.subr.mxu0 0.0
  %142 = vmatpush1.xpose.msra.mxu0 0.0
  %143 = vmatprep.subr.mxu0 0.0
  %144 = vmatpush1.xpose.msra.mxu0 0.0
  %145 = vmatprep.subr.mxu0 0.0
  %146 = vmatpush1.xpose.msra.mxu0 0.0
  %147 = vmatprep.subr.mxu0 0.0
  %148 = vmatpush1.xpose.msra.mxu0 0.0
  %149 = vmatprep.subr.mxu0 0.0
  %150 = vmatpush1.xpose.msra.mxu0 0.0
  %151 = vmatprep.subr.mxu0 0.0
  %152 = vmatpush1.xpose.msra.mxu0 0.0
  %153 = vmatprep.subr.mxu0 0.0
  %154 = vmatpush1.xpose.msra.mxu0 0.0
  %155 = vmatprep.subr.mxu0 0.0
  %156 = vmatpush1.xpose.msra.mxu0 0.0
  %157 = vmatprep.subr.mxu0 0.0
  %158 = vmatpush1.xpose.msra.mxu0 0.0
  %159 = vmatprep.subr.mxu0 0.0
  %160 = vmatpush1.xpose.msra.mxu0 0.0
  %161 = vmatprep.subr.mxu0 0.0
  %162 = vmatpush1.xpose.msra.mxu0 0.0
  %163 = vmatprep.subr.mxu0 0.0
  %164 = vmatpush1.xpose.msra.mxu0 0.0
  %165 = vmatprep.subr.mxu0 0.0
  %166 = vmatpush1.xpose.msra.mxu0 0.0
  %167 = vmatprep.subr.mxu0 0.0
  %168 = vmatpush1.xpose.msra.mxu0 0.0
  %169 = vmatprep.subr.mxu0 0.0
  %170 = vmatpush1.xpose.msra.mxu0 0.0
  %171 = vmatprep.subr.mxu0 0.0
  %172 = vmatpush1.xpose.msra.mxu0 0.0
  %173 = vmatprep.subr.mxu0 0.0
  %174 = vmatpush1.xpose.msra.mxu0 0.0
  %175 = vmatprep.subr.mxu0 0.0
  %176 = vmatpush1.xpose.msra.mxu0 0.0
  %177 = vmatprep.subr.mxu0 0.0
  %178 = vmatpush1.xpose.msra.mxu0 0.0
  %179 = vmatprep.subr.mxu0 0.0
  %180 = vmatpush1.xpose.msra.mxu0 0.0
  %181 = vmatprep.subr.mxu0 0.0
  %182 = vmatpush1.xpose.msra.mxu0 0.0
  %183 = vmatprep.subr.mxu0 0.0
  %184 = vmatpush1.xpose.msra.mxu0 0.0
  %185 = vmatprep.subr.mxu0 0.0
  %186 = vmatpush1.xpose.msra.mxu0 0.0
  %187 = vmatprep.subr.mxu0 0.0
  %188 = vmatpush1.xpose.msra.mxu0 0.0
  %189 = vmatprep.subr.mxu0 0.0
  %190 = vmatpush1.xpose.msra.mxu0 0.0
  %191 = vmatprep.mubr.f32.mxu0 0.0
  %v192 = vand.u32 %v41, 4294901760
  %193 = vmatmul.mubr.f32.gmra.mrb[0].mxu0 %v192
  %v194 = vpop.f32.mrb[0].mxu0
  %v195 = vadd.f32 %v119, %v194
  %v196 = vpop.f32.mrb[0].mxu0
  %197 = vdwg.mxu0
  %198 = vmatprep.subr.mxu0 0.0
  %v199 = vand.u32 %v44, 4294901760
  %v200 = vsub.f32 %v44, %v199
  %201 = vmatpush1.xpose.msra.mxu0 %v200
  %202 = vmatprep.subr.mxu0 0.0
  %203 = vmatpush1.xpose.msra.mxu0 0.0
  %204 = vmatprep.subr.mxu0 0.0
  %205 = vmatpush1.xpose.msra.mxu0 0.0
  %206 = vmatprep.subr.mxu0 0.0
  %207 = vmatpush1.xpose.msra.mxu0 0.0
  %208 = vmatprep.subr.mxu0 0.0
  %209 = vmatpush1.xpose.msra.mxu0 0.0
  %210 = vmatprep.subr.mxu0 0.0
  %211 = vmatpush1.xpose.msra.mxu0 0.0
  %212 = vmatprep.subr.mxu0 0.0
  %213 = vmatpush1.xpose.msra.mxu0 0.0
  %214 = vmatprep.subr.mxu0 0.0
  %215 = vmatpush1.xpose.msra.mxu0 0.0
  %216 = vmatprep.subr.mxu0 0.0
  %217 = vmatpush1.xpose.msra.mxu0 0.0
  %218 = vmatprep.subr.mxu0 0.0
  %219 = vmatpush1.xpose.msra.mxu0 0.0
  %220 = vmatprep.subr.mxu0 0.0
  %221 = vmatpush1.xpose.msra.mxu0 0.0
  %222 = vmatprep.subr.mxu0 0.0
  %223 = vmatpush1.xpose.msra.mxu0 0.0
  %224 = vmatprep.subr.mxu0 0.0
  %225 = vmatpush1.xpose.msra.mxu0 0.0
  %226 = vmatprep.subr.mxu0 0.0
  %227 = vmatpush1.xpose.msra.mxu0 0.0
  %228 = vmatprep.subr.mxu0 0.0
  %229 = vmatpush1.xpose.msra.mxu0 0.0
  %230 = vmatprep.subr.mxu0 0.0
  %231 = vmatpush1.xpose.msra.mxu0 0.0
  %232 = vmatprep.subr.mxu0 0.0
  %233 = vmatpush1.xpose.msra.mxu0 0.0
  %234 = vmatprep.subr.mxu0 0.0
  %235 = vmatpush1.xpose.msra.mxu0 0.0
  %236 = vmatprep.subr.mxu0 0.0
  %237 = vmatpush1.xpose.msra.mxu0 0.0
  %238 = vmatprep.subr.mxu0 0.0
  %239 = vmatpush1.xpose.msra.mxu0 0.0
  %240 = vmatprep.subr.mxu0 0.0
  %241 = vmatpush1.xpose.msra.mxu0 0.0
  %242 = vmatprep.subr.mxu0 0.0
  %243 = vmatpush1.xpose.msra.mxu0 0.0
  %244 = vmatprep.subr.mxu0 0.0
  %245 = vmatpush1.xpose.msra.mxu0 0.0
  %246 = vmatprep.subr.mxu0 0.0
  %247 = vmatpush1.xpose.msra.mxu0 0.0
  %248 = vmatprep.subr.mxu0 0.0
  %249 = vmatpush1.xpose.msra.mxu0 0.0
  %250 = vmatprep.subr.mxu0 0.0
  %251 = vmatpush1.xpose.msra.mxu0 0.0
  %252 = vmatprep.subr.mxu0 0.0
  %253 = vmatpush1.xpose.msra.mxu0 0.0
  %254 = vmatprep.subr.mxu0 0.0
  %255 = vmatpush1.xpose.msra.mxu0 0.0
  %256 = vmatprep.subr.mxu0 0.0
  %257 = vmatpush1.xpose.msra.mxu0 0.0
  %258 = vmatprep.subr.mxu0 0.0
  %259 = vmatpush1.xpose.msra.mxu0 0.0
  %260 = vmatprep.subr.mxu0 0.0
  %261 = vmatpush1.xpose.msra.mxu0 0.0
  %262 = vmatprep.subr.mxu0 0.0
  %263 = vmatpush1.xpose.msra.mxu0 0.0
  %264 = vmatprep.mubr.f32.mxu0 0.0
  %v265 = vand.u32 %v41, 4294901760
  %v266 = vsub.f32 %v41, %v265
  %267 = vmatmul.mubr.f32.gmra.mrb[0].mxu0 %v266
  %v268 = vpop.f32.mrb[0].mxu0
  %v269 = vadd.f32 %v195, %v268
  %v270 = vpop.f32.mrb[0].mxu0
  %271 = vdwg.mxu0
  %272 = vmatprep.subr.mxu0 0.0
  %v273 = vand.u32 %v44, 4294901760
  %274 = vmatpush1.xpose.msra.mxu0 %v273
  %275 = vmatprep.subr.mxu0 0.0
  %276 = vmatpush1.xpose.msra.mxu0 0.0
  %277 = vmatprep.subr.mxu0 0.0
  %278 = vmatpush1.xpose.msra.mxu0 0.0
  %279 = vmatprep.subr.mxu0 0.0
  %280 = vmatpush1.xpose.msra.mxu0 0.0
  %281 = vmatprep.subr.mxu0 0.0
  %282 = vmatpush1.xpose.msra.mxu0 0.0
  %283 = vmatprep.subr.mxu0 0.0
  %284 = vmatpush1.xpose.msra.mxu0 0.0
  %285 = vmatprep.subr.mxu0 0.0
  %286 = vmatpush1.xpose.msra.mxu0 0.0
  %287 = vmatprep.subr.mxu0 0.0
  %288 = vmatpush1.xpose.msra.mxu0 0.0
  %289 = vmatprep.subr.mxu0 0.0
  %290 = vmatpush1.xpose.msra.mxu0 0.0
  %291 = vmatprep.subr.mxu0 0.0
  %292 = vmatpush1.xpose.msra.mxu0 0.0
  %293 = vmatprep.subr.mxu0 0.0
  %294 = vmatpush1.xpose.msra.mxu0 0.0
  %295 = vmatprep.subr.mxu0 0.0
  %296 = vmatpush1.xpose.msra.mxu0 0.0
  %297 = vmatprep.subr.mxu0 0.0
  %298 = vmatpush1.xpose.msra.mxu0 0.0
  %299 = vmatprep.subr.mxu0 0.0
  %300 = vmatpush1.xpose.msra.mxu0 0.0
  %301 = vmatprep.subr.mxu0 0.0
  %302 = vmatpush1.xpose.msra.mxu0 0.0
  %303 = vmatprep.subr.mxu0 0.0
  %304 = vmatpush1.xpose.msra.mxu0 0.0
  %305 = vmatprep.subr.mxu0 0.0
  %306 = vmatpush1.xpose.msra.mxu0 0.0
  %307 = vmatprep.subr.mxu0 0.0
  %308 = vmatpush1.xpose.msra.mxu0 0.0
  %309 = vmatprep.subr.mxu0 0.0
  %310 = vmatpush1.xpose.msra.mxu0 0.0
  %311 = vmatprep.subr.mxu0 0.0
  %312 = vmatpush1.xpose.msra.mxu0 0.0
  %313 = vmatprep.subr.mxu0 0.0
  %314 = vmatpush1.xpose.msra.mxu0 0.0
  %315 = vmatprep.subr.mxu0 0.0
  %316 = vmatpush1.xpose.msra.mxu0 0.0
  %317 = vmatprep.subr.mxu0 0.0
  %318 = vmatpush1.xpose.msra.mxu0 0.0
  %319 = vmatprep.subr.mxu0 0.0
  %320 = vmatpush1.xpose.msra.mxu0 0.0
  %321 = vmatprep.subr.mxu0 0.0
  %322 = vmatpush1.xpose.msra.mxu0 0.0
  %323 = vmatprep.subr.mxu0 0.0
  %324 = vmatpush1.xpose.msra.mxu0 0.0
  %325 = vmatprep.subr.mxu0 0.0
  %326 = vmatpush1.xpose.msra.mxu0 0.0
  %327 = vmatprep.subr.mxu0 0.0
  %328 = vmatpush1.xpose.msra.mxu0 0.0
  %329 = vmatprep.subr.mxu0 0.0
  %330 = vmatpush1.xpose.msra.mxu0 0.0
  %331 = vmatprep.subr.mxu0 0.0
  %332 = vmatpush1.xpose.msra.mxu0 0.0
  %333 = vmatprep.subr.mxu0 0.0
  %334 = vmatpush1.xpose.msra.mxu0 0.0
  %335 = vmatprep.subr.mxu0 0.0
  %336 = vmatpush1.xpose.msra.mxu0 0.0
  %337 = vmatprep.mubr.f32.mxu0 0.0
  %v338 = vand.u32 %v41, 4294901760
  %v339 = vsub.f32 %v41, %v338
  %v340 = vand.u32 %v339, 4294901760
  %341 = vmatmul.mubr.f32.gmra.mrb[0].mxu0 %v340
  %v342 = vpop.f32.mrb[0].mxu0
  %v343 = vadd.f32 %v269, %v342
  %v344 = vpop.f32.mrb[0].mxu0
  %345 = vdwg.mxu0
  %346 = vmatprep.subr.mxu0 0.0
  %v347 = vand.u32 %v44, 4294901760
  %v348 = vsub.f32 %v44, %v347
  %v349 = vand.u32 %v348, 4294901760
  %350 = vmatpush1.xpose.msra.mxu0 %v349
  %351 = vmatprep.subr.mxu0 0.0
  %352 = vmatpush1.xpose.msra.mxu0 0.0
  %353 = vmatprep.subr.mxu0 0.0
  %354 = vmatpush1.xpose.msra.mxu0 0.0
  %355 = vmatprep.subr.mxu0 0.0
  %356 = vmatpush1.xpose.msra.mxu0 0.0
  %357 = vmatprep.subr.mxu0 0.0
  %358 = vmatpush1.xpose.msra.mxu0 0.0
  %359 = vmatprep.subr.mxu0 0.0
  %360 = vmatpush1.xpose.msra.mxu0 0.0
  %361 = vmatprep.subr.mxu0 0.0
  %362 = vmatpush1.xpose.msra.mxu0 0.0
  %363 = vmatprep.subr.mxu0 0.0
  %364 = vmatpush1.xpose.msra.mxu0 0.0
  %365 = vmatprep.subr.mxu0 0.0
  %366 = vmatpush1.xpose.msra.mxu0 0.0
  %367 = vmatprep.subr.mxu0 0.0
  %368 = vmatpush1.xpose.msra.mxu0 0.0
  %369 = vmatprep.subr.mxu0 0.0
  %370 = vmatpush1.xpose.msra.mxu0 0.0
  %371 = vmatprep.subr.mxu0 0.0
  %372 = vmatpush1.xpose.msra.mxu0 0.0
  %373 = vmatprep.subr.mxu0 0.0
  %374 = vmatpush1.xpose.msra.mxu0 0.0
  %375 = vmatprep.subr.mxu0 0.0
  %376 = vmatpush1.xpose.msra.mxu0 0.0
  %377 = vmatprep.subr.mxu0 0.0
  %378 = vmatpush1.xpose.msra.mxu0 0.0
  %379 = vmatprep.subr.mxu0 0.0
  %380 = vmatpush1.xpose.msra.mxu0 0.0
  %381 = vmatprep.subr.mxu0 0.0
  %382 = vmatpush1.xpose.msra.mxu0 0.0
  %383 = vmatprep.subr.mxu0 0.0
  %384 = vmatpush1.xpose.msra.mxu0 0.0
  %385 = vmatprep.subr.mxu0 0.0
  %386 = vmatpush1.xpose.msra.mxu0 0.0
  %387 = vmatprep.subr.mxu0 0.0
  %388 = vmatpush1.xpose.msra.mxu0 0.0
  %389 = vmatprep.subr.mxu0 0.0
  %390 = vmatpush1.xpose.msra.mxu0 0.0
  %391 = vmatprep.subr.mxu0 0.0
  %392 = vmatpush1.xpose.msra.mxu0 0.0
  %393 = vmatprep.subr.mxu0 0.0
  %394 = vmatpush1.xpose.msra.mxu0 0.0
  %395 = vmatprep.subr.mxu0 0.0
  %396 = vmatpush1.xpose.msra.mxu0 0.0
  %397 = vmatprep.subr.mxu0 0.0
  %398 = vmatpush1.xpose.msra.mxu0 0.0
  %399 = vmatprep.subr.mxu0 0.0
  %400 = vmatpush1.xpose.msra.mxu0 0.0
  %401 = vmatprep.subr.mxu0 0.0
  %402 = vmatpush1.xpose.msra.mxu0 0.0
  %403 = vmatprep.subr.mxu0 0.0
  %404 = vmatpush1.xpose.msra.mxu0 0.0
  %405 = vmatprep.subr.mxu0 0.0
  %406 = vmatpush1.xpose.msra.mxu0 0.0
  %407 = vmatprep.subr.mxu0 0.0
  %408 = vmatpush1.xpose.msra.mxu0 0.0
  %409 = vmatprep.subr.mxu0 0.0
  %410 = vmatpush1.xpose.msra.mxu0 0.0
  %411 = vmatprep.subr.mxu0 0.0
  %412 = vmatpush1.xpose.msra.mxu0 0.0
  %413 = vmatprep.mubr.f32.mxu0 0.0
  %v414 = vand.u32 %v41, 4294901760
  %415 = vmatmul.mubr.f32.gmra.mrb[0].mxu0 %v414
  %v416 = vpop.f32.mrb[0].mxu0
  %v417 = vadd.f32 %v343, %v416
  %v418 = vpop.f32.mrb[0].mxu0
  %419 = vdwg.mxu0
  %420 = vmatprep.subr.mxu0 0.0
  %v421 = vand.u32 %v44, 4294901760
  %422 = vmatpush1.xpose.msra.mxu0 %v421
  %423 = vmatprep.subr.mxu0 0.0
  %424 = vmatpush1.xpose.msra.mxu0 0.0
  %425 = vmatprep.subr.mxu0 0.0
  %426 = vmatpush1.xpose.msra.mxu0 0.0
  %427 = vmatprep.subr.mxu0 0.0
  %428 = vmatpush1.xpose.msra.mxu0 0.0
  %429 = vmatprep.subr.mxu0 0.0
  %430 = vmatpush1.xpose.msra.mxu0 0.0
  %431 = vmatprep.subr.mxu0 0.0
  %432 = vmatpush1.xpose.msra.mxu0 0.0
  %433 = vmatprep.subr.mxu0 0.0
  %434 = vmatpush1.xpose.msra.mxu0 0.0
  %435 = vmatprep.subr.mxu0 0.0
  %436 = vmatpush1.xpose.msra.mxu0 0.0
  %437 = vmatprep.subr.mxu0 0.0
  %438 = vmatpush1.xpose.msra.mxu0 0.0
  %439 = vmatprep.subr.mxu0 0.0
  %440 = vmatpush1.xpose.msra.mxu0 0.0
  %441 = vmatprep.subr.mxu0 0.0
  %442 = vmatpush1.xpose.msra.mxu0 0.0
  %443 = vmatprep.subr.mxu0 0.0
  %444 = vmatpush1.xpose.msra.mxu0 0.0
  %445 = vmatprep.subr.mxu0 0.0
  %446 = vmatpush1.xpose.msra.mxu0 0.0
  %447 = vmatprep.subr.mxu0 0.0
  %448 = vmatpush1.xpose.msra.mxu0 0.0
  %449 = vmatprep.subr.mxu0 0.0
  %450 = vmatpush1.xpose.msra.mxu0 0.0
  %451 = vmatprep.subr.mxu0 0.0
  %452 = vmatpush1.xpose.msra.mxu0 0.0
  %453 = vmatprep.subr.mxu0 0.0
  %454 = vmatpush1.xpose.msra.mxu0 0.0
  %455 = vmatprep.subr.mxu0 0.0
  %456 = vmatpush1.xpose.msra.mxu0 0.0
  %457 = vmatprep.subr.mxu0 0.0
  %458 = vmatpush1.xpose.msra.mxu0 0.0
  %459 = vmatprep.subr.mxu0 0.0
  %460 = vmatpush1.xpose.msra.mxu0 0.0
  %461 = vmatprep.subr.mxu0 0.0
  %462 = vmatpush1.xpose.msra.mxu0 0.0
  %463 = vmatprep.subr.mxu0 0.0
  %464 = vmatpush1.xpose.msra.mxu0 0.0
  %465 = vmatprep.subr.mxu0 0.0
  %466 = vmatpush1.xpose.msra.mxu0 0.0
  %467 = vmatprep.subr.mxu0 0.0
  %468 = vmatpush1.xpose.msra.mxu0 0.0
  %469 = vmatprep.subr.mxu0 0.0
  %470 = vmatpush1.xpose.msra.mxu0 0.0
  %471 = vmatprep.subr.mxu0 0.0
  %472 = vmatpush1.xpose.msra.mxu0 0.0
  %473 = vmatprep.subr.mxu0 0.0
  %474 = vmatpush1.xpose.msra.mxu0 0.0
  %475 = vmatprep.subr.mxu0 0.0
  %476 = vmatpush1.xpose.msra.mxu0 0.0
  %477 = vmatprep.subr.mxu0 0.0
  %478 = vmatpush1.xpose.msra.mxu0 0.0
  %479 = vmatprep.subr.mxu0 0.0
  %480 = vmatpush1.xpose.msra.mxu0 0.0
  %481 = vmatprep.subr.mxu0 0.0
  %482 = vmatpush1.xpose.msra.mxu0 0.0
  %483 = vmatprep.subr.mxu0 0.0
  %484 = vmatpush1.xpose.msra.mxu0 0.0
  %485 = vmatprep.mubr.f32.mxu0 0.0
  %v486 = vand.u32 %v41, 4294901760
  %487 = vmatmul.mubr.f32.gmra.mrb[0].mxu0 %v486
  %v488 = vpop.f32.mrb[0].mxu0
  %v489 = vadd.f32 %v417, %v488
  %v490 = vpop.f32.mrb[0].mxu0
  %491 = vdwg.mxu0
  %v492 = vld [vmem:[#allocation2] sm:$0xff]
  %v493 = vmul.f32 %v492, 20.0
  %495 = vset.pattern.permute.xlu0 0
  %496 = vperm.xlu0 %495, %v493
  %v497 = vpop.permute.xlu0 %496
  %v499 = vmul.f32 %v489, %v497
  %v500 = vlaneseq
  %v501 = vshrl.u32 %v500, 7
  %v502 = vlaneseq
  %v503 = vand.u32 %v502, 127
  %v504 = vstv %s27
  %v505 = vadd.s32 %v503, %v504
  %vm506 = vcmp.eq.s32.totalorder %v501, %v505
  %v507 = vsel %vm506, -1e+09, %v499
  %v508 = vmul.f32 %v507, 1.442695
  %v509 = vpow.pop %v508
  %s510 = scalar_lea.vmem %s0, %s27
  %v511 = vld [vmem:[%s510] sm:$0xff]
  %v512 = vld [vmem:[#allocation3] sm:$0xff]
  %vm513 = vcmask 64512
  %v515 = vsel %vm513, %v509, 0
  %517 = vmatprep.subr.mxu0 0.0
  %v518 = vand.u32 %v511, 4294901760
  %519 = vmatpush1.msra.mxu0 %v518
  %520 = vmatprep.subr.mxu0 0.0
  %521 = vmatpush1.msra.mxu0 0.0
  %522 = vmatprep.subr.mxu0 0.0
  %523 = vmatpush1.msra.mxu0 0.0
  %524 = vmatprep.subr.mxu0 0.0
  %525 = vmatpush1.msra.mxu0 0.0
  %526 = vmatprep.subr.mxu0 0.0
  %527 = vmatpush1.msra.mxu0 0.0
  %528 = vmatprep.subr.mxu0 0.0
  %529 = vmatpush1.msra.mxu0 0.0
  %530 = vmatprep.subr.mxu0 0.0
  %531 = vmatpush1.msra.mxu0 0.0
  %532 = vmatprep.subr.mxu0 0.0
  %533 = vmatpush1.msra.mxu0 0.0
  %534 = vmatprep.subr.mxu0 0.0
  %535 = vmatpush1.msra.mxu0 0.0
  %536 = vmatprep.subr.mxu0 0.0
  %537 = vmatpush1.msra.mxu0 0.0
  %538 = vmatprep.subr.mxu0 0.0
  %539 = vmatpush1.msra.mxu0 0.0
  %540 = vmatprep.subr.mxu0 0.0
  %541 = vmatpush1.msra.mxu0 0.0
  %542 = vmatprep.subr.mxu0 0.0
  %543 = vmatpush1.msra.mxu0 0.0
  %544 = vmatprep.subr.mxu0 0.0
  %545 = vmatpush1.msra.mxu0 0.0
  %546 = vmatprep.subr.mxu0 0.0
  %547 = vmatpush1.msra.mxu0 0.0
  %548 = vmatprep.subr.mxu0 0.0
  %549 = vmatpush1.msra.mxu0 0.0
  %550 = vmatprep.subr.mxu0 0.0
  %551 = vmatpush1.msra.mxu0 0.0
  %552 = vmatprep.subr.mxu0 0.0
  %553 = vmatpush1.msra.mxu0 0.0
  %554 = vmatprep.subr.mxu0 0.0
  %555 = vmatpush1.msra.mxu0 0.0
  %556 = vmatprep.subr.mxu0 0.0
  %557 = vmatpush1.msra.mxu0 0.0
  %558 = vmatprep.subr.mxu0 0.0
  %559 = vmatpush1.msra.mxu0 0.0
  %560 = vmatprep.subr.mxu0 0.0
  %561 = vmatpush1.msra.mxu0 0.0
  %562 = vmatprep.subr.mxu0 0.0
  %563 = vmatpush1.msra.mxu0 0.0
  %564 = vmatprep.subr.mxu0 0.0
  %565 = vmatpush1.msra.mxu0 0.0
  %566 = vmatprep.subr.mxu0 0.0
  %567 = vmatpush1.msra.mxu0 0.0
  %568 = vmatprep.subr.mxu0 0.0
  %569 = vmatpush1.msra.mxu0 0.0
  %570 = vmatprep.subr.mxu0 0.0
  %571 = vmatpush1.msra.mxu0 0.0
  %572 = vmatprep.subr.mxu0 0.0
  %573 = vmatpush1.msra.mxu0 0.0
  %574 = vmatprep.subr.mxu0 0.0
  %575 = vmatpush1.msra.mxu0 0.0
  %576 = vmatprep.subr.mxu0 0.0
  %577 = vmatpush1.msra.mxu0 0.0
  %578 = vmatprep.subr.mxu0 0.0
  %579 = vmatpush1.msra.mxu0 0.0
  %580 = vmatprep.subr.mxu0 0.0
  %581 = vmatpush1.msra.mxu0 0.0
  %582 = vmatprep.mubr.f32.mxu0 0.0
  %v583 = vand.u32 %v515, 4294901760
  %v584 = vsub.f32 %v515, %v583
  %v585 = vand.u32 %v584, 4294901760
  %v586 = vsub.f32 %v584, %v585
  %v587 = vand.u32 %v586, 4294901760
  %588 = vmatmul.mubr.f32.gmra.mrb[0].mxu0 %v587
  %v589 = vpop.f32.mrb[0].mxu0
  %v590 = vadd.f32 0.0, %v589
  %v591 = vpop.f32.mrb[0].mxu0
  %592 = vdwg.mxu0
  %593 = vmatprep.subr.mxu0 0.0
  %v594 = vand.u32 %v511, 4294901760
  %v595 = vsub.f32 %v511, %v594
  %v596 = vand.u32 %v595, 4294901760
  %v597 = vsub.f32 %v595, %v596
  %v598 = vand.u32 %v597, 4294901760
  %599 = vmatpush1.msra.mxu0 %v598
  %600 = vmatprep.subr.mxu0 0.0
  %601 = vmatpush1.msra.mxu0 0.0
  %602 = vmatprep.subr.mxu0 0.0
  %603 = vmatpush1.msra.mxu0 0.0
  %604 = vmatprep.subr.mxu0 0.0
  %605 = vmatpush1.msra.mxu0 0.0
  %606 = vmatprep.subr.mxu0 0.0
  %607 = vmatpush1.msra.mxu0 0.0
  %608 = vmatprep.subr.mxu0 0.0
  %609 = vmatpush1.msra.mxu0 0.0
  %610 = vmatprep.subr.mxu0 0.0
  %611 = vmatpush1.msra.mxu0 0.0
  %612 = vmatprep.subr.mxu0 0.0
  %613 = vmatpush1.msra.mxu0 0.0
  %614 = vmatprep.subr.mxu0 0.0
  %615 = vmatpush1.msra.mxu0 0.0
  %616 = vmatprep.subr.mxu0 0.0
  %617 = vmatpush1.msra.mxu0 0.0
  %618 = vmatprep.subr.mxu0 0.0
  %619 = vmatpush1.msra.mxu0 0.0
  %620 = vmatprep.subr.mxu0 0.0
  %621 = vmatpush1.msra.mxu0 0.0
  %622 = vmatprep.subr.mxu0 0.0
  %623 = vmatpush1.msra.mxu0 0.0
  %624 = vmatprep.subr.mxu0 0.0
  %625 = vmatpush1.msra.mxu0 0.0
  %626 = vmatprep.subr.mxu0 0.0
  %627 = vmatpush1.msra.mxu0 0.0
  %628 = vmatprep.subr.mxu0 0.0
  %629 = vmatpush1.msra.mxu0 0.0
  %630 = vmatprep.subr.mxu0 0.0
  %631 = vmatpush1.msra.mxu0 0.0
  %632 = vmatprep.subr.mxu0 0.0
  %633 = vmatpush1.msra.mxu0 0.0
  %634 = vmatprep.subr.mxu0 0.0
  %635 = vmatpush1.msra.mxu0 0.0
  %636 = vmatprep.subr.mxu0 0.0
  %637 = vmatpush1.msra.mxu0 0.0
  %638 = vmatprep.subr.mxu0 0.0
  %639 = vmatpush1.msra.mxu0 0.0
  %640 = vmatprep.subr.mxu0 0.0
  %641 = vmatpush1.msra.mxu0 0.0
  %642 = vmatprep.subr.mxu0 0.0
  %643 = vmatpush1.msra.mxu0 0.0
  %644 = vmatprep.subr.mxu0 0.0
  %645 = vmatpush1.msra.mxu0 0.0
  %646 = vmatprep.subr.mxu0 0.0
  %647 = vmatpush1.msra.mxu0 0.0
  %648 = vmatprep.subr.mxu0 0.0
  %649 = vmatpush1.msra.mxu0 0.0
  %650 = vmatprep.subr.mxu0 0.0
  %651 = vmatpush1.msra.mxu0 0.0
  %652 = vmatprep.subr.mxu0 0.0
  %653 = vmatpush1.msra.mxu0 0.0
  %654 = vmatprep.subr.mxu0 0.0
  %655 = vmatpush1.msra.mxu0 0.0
  %656 = vmatprep.subr.mxu0 0.0
  %657 = vmatpush1.msra.mxu0 0.0
  %658 = vmatprep.subr.mxu0 0.0
  %659 = vmatpush1.msra.mxu0 0.0
  %660 = vmatprep.subr.mxu0 0.0
  %661 = vmatpush1.msra.mxu0 0.0
  %662 = vmatprep.mubr.f32.mxu0 0.0
  %v663 = vand.u32 %v515, 4294901760
  %664 = vmatmul.mubr.f32.gmra.mrb[0].mxu0 %v663
  %v665 = vpop.f32.mrb[0].mxu0
  %v666 = vadd.f32 %v590, %v665
  %v667 = vpop.f32.mrb[0].mxu0
  %668 = vdwg.mxu0
  %669 = vmatprep.subr.mxu0 0.0
  %v670 = vand.u32 %v511, 4294901760
  %v671 = vsub.f32 %v511, %v670
  %672 = vmatpush1.msra.mxu0 %v671
  %673 = vmatprep.subr.mxu0 0.0
  %674 = vmatpush1.msra.mxu0 0.0
  %675 = vmatprep.subr.mxu0 0.0
  %676 = vmatpush1.msra.mxu0 0.0
  %677 = vmatprep.subr.mxu0 0.0
  %678 = vmatpush1.msra.mxu0 0.0
  %679 = vmatprep.subr.mxu0 0.0
  %680 = vmatpush1.msra.mxu0 0.0
  %681 = vmatprep.subr.mxu0 0.0
  %682 = vmatpush1.msra.mxu0 0.0
  %683 = vmatprep.subr.mxu0 0.0
  %684 = vmatpush1.msra.mxu0 0.0
  %685 = vmatprep.subr.mxu0 0.0
  %686 = vmatpush1.msra.mxu0 0.0
  %687 = vmatprep.subr.mxu0 0.0
  %688 = vmatpush1.msra.mxu0 0.0
  %689 = vmatprep.subr.mxu0 0.0
  %690 = vmatpush1.msra.mxu0 0.0
  %691 = vmatprep.subr.mxu0 0.0
  %692 = vmatpush1.msra.mxu0 0.0
  %693 = vmatprep.subr.mxu0 0.0
  %694 = vmatpush1.msra.mxu0 0.0
  %695 = vmatprep.subr.mxu0 0.0
  %696 = vmatpush1.msra.mxu0 0.0
  %697 = vmatprep.subr.mxu0 0.0
  %698 = vmatpush1.msra.mxu0 0.0
  %699 = vmatprep.subr.mxu0 0.0
  %700 = vmatpush1.msra.mxu0 0.0
  %701 = vmatprep.subr.mxu0 0.0
  %702 = vmatpush1.msra.mxu0 0.0
  %703 = vmatprep.subr.mxu0 0.0
  %704 = vmatpush1.msra.mxu0 0.0
  %705 = vmatprep.subr.mxu0 0.0
  %706 = vmatpush1.msra.mxu0 0.0
  %707 = vmatprep.subr.mxu0 0.0
  %708 = vmatpush1.msra.mxu0 0.0
  %709 = vmatprep.subr.mxu0 0.0
  %710 = vmatpush1.msra.mxu0 0.0
  %711 = vmatprep.subr.mxu0 0.0
  %712 = vmatpush1.msra.mxu0 0.0
  %713 = vmatprep.subr.mxu0 0.0
  %714 = vmatpush1.msra.mxu0 0.0
  %715 = vmatprep.subr.mxu0 0.0
  %716 = vmatpush1.msra.mxu0 0.0
  %717 = vmatprep.subr.mxu0 0.0
  %718 = vmatpush1.msra.mxu0 0.0
  %719 = vmatprep.subr.mxu0 0.0
  %720 = vmatpush1.msra.mxu0 0.0
  %721 = vmatprep.subr.mxu0 0.0
  %722 = vmatpush1.msra.mxu0 0.0
  %723 = vmatprep.subr.mxu0 0.0
  %724 = vmatpush1.msra.mxu0 0.0
  %725 = vmatprep.subr.mxu0 0.0
  %726 = vmatpush1.msra.mxu0 0.0
  %727 = vmatprep.subr.mxu0 0.0
  %728 = vmatpush1.msra.mxu0 0.0
  %729 = vmatprep.subr.mxu0 0.0
  %730 = vmatpush1.msra.mxu0 0.0
  %731 = vmatprep.subr.mxu0 0.0
  %732 = vmatpush1.msra.mxu0 0.0
  %733 = vmatprep.subr.mxu0 0.0
  %734 = vmatpush1.msra.mxu0 0.0
  %735 = vmatprep.mubr.f32.mxu0 0.0
  %v736 = vand.u32 %v515, 4294901760
  %v737 = vsub.f32 %v515, %v736
  %738 = vmatmul.mubr.f32.gmra.mrb[0].mxu0 %v737
  %v739 = vpop.f32.mrb[0].mxu0
  %v740 = vadd.f32 %v666, %v739
  %v741 = vpop.f32.mrb[0].mxu0
  %742 = vdwg.mxu0
  %743 = vmatprep.subr.mxu0 0.0
  %v744 = vand.u32 %v511, 4294901760
  %745 = vmatpush1.msra.mxu0 %v744
  %746 = vmatprep.subr.mxu0 0.0
  %747 = vmatpush1.msra.mxu0 0.0
  %748 = vmatprep.subr.mxu0 0.0
  %749 = vmatpush1.msra.mxu0 0.0
  %750 = vmatprep.subr.mxu0 0.0
  %751 = vmatpush1.msra.mxu0 0.0
  %752 = vmatprep.subr.mxu0 0.0
  %753 = vmatpush1.msra.mxu0 0.0
  %754 = vmatprep.subr.mxu0 0.0
  %755 = vmatpush1.msra.mxu0 0.0
  %756 = vmatprep.subr.mxu0 0.0
  %757 = vmatpush1.msra.mxu0 0.0
  %758 = vmatprep.subr.mxu0 0.0
  %759 = vmatpush1.msra.mxu0 0.0
  %760 = vmatprep.subr.mxu0 0.0
  %761 = vmatpush1.msra.mxu0 0.0
  %762 = vmatprep.subr.mxu0 0.0
  %763 = vmatpush1.msra.mxu0 0.0
  %764 = vmatprep.subr.mxu0 0.0
  %765 = vmatpush1.msra.mxu0 0.0
  %766 = vmatprep.subr.mxu0 0.0
  %767 = vmatpush1.msra.mxu0 0.0
  %768 = vmatprep.subr.mxu0 0.0
  %769 = vmatpush1.msra.mxu0 0.0
  %770 = vmatprep.subr.mxu0 0.0
  %771 = vmatpush1.msra.mxu0 0.0
  %772 = vmatprep.subr.mxu0 0.0
  %773 = vmatpush1.msra.mxu0 0.0
  %774 = vmatprep.subr.mxu0 0.0
  %775 = vmatpush1.msra.mxu0 0.0
  %776 = vmatprep.subr.mxu0 0.0
  %777 = vmatpush1.msra.mxu0 0.0
  %778 = vmatprep.subr.mxu0 0.0
  %779 = vmatpush1.msra.mxu0 0.0
  %780 = vmatprep.subr.mxu0 0.0
  %781 = vmatpush1.msra.mxu0 0.0
  %782 = vmatprep.subr.mxu0 0.0
  %783 = vmatpush1.msra.mxu0 0.0
  %784 = vmatprep.subr.mxu0 0.0
  %785 = vmatpush1.msra.mxu0 0.0
  %786 = vmatprep.subr.mxu0 0.0
  %787 = vmatpush1.msra.mxu0 0.0
  %788 = vmatprep.subr.mxu0 0.0
  %789 = vmatpush1.msra.mxu0 0.0
  %790 = vmatprep.subr.mxu0 0.0
  %791 = vmatpush1.msra.mxu0 0.0
  %792 = vmatprep.subr.mxu0 0.0
  %793 = vmatpush1.msra.mxu0 0.0
  %794 = vmatprep.subr.mxu0 0.0
  %795 = vmatpush1.msra.mxu0 0.0
  %796 = vmatprep.subr.mxu0 0.0
  %797 = vmatpush1.msra.mxu0 0.0
  %798 = vmatprep.subr.mxu0 0.0
  %799 = vmatpush1.msra.mxu0 0.0
  %800 = vmatprep.subr.mxu0 0.0
  %801 = vmatpush1.msra.mxu0 0.0
  %802 = vmatprep.subr.mxu0 0.0
  %803 = vmatpush1.msra.mxu0 0.0
  %804 = vmatprep.subr.mxu0 0.0
  %805 = vmatpush1.msra.mxu0 0.0
  %806 = vmatprep.subr.mxu0 0.0
  %807 = vmatpush1.msra.mxu0 0.0
  %808 = vmatprep.mubr.f32.mxu0 0.0
  %v809 = vand.u32 %v515, 4294901760
  %v810 = vsub.f32 %v515, %v809
  %v811 = vand.u32 %v810, 4294901760
  %812 = vmatmul.mubr.f32.gmra.mrb[0].mxu0 %v811
  %v813 = vpop.f32.mrb[0].mxu0
  %v814 = vadd.f32 %v740, %v813
  %v815 = vpop.f32.mrb[0].mxu0
  %816 = vdwg.mxu0
  %817 = vmatprep.subr.mxu0 0.0
  %v818 = vand.u32 %v511, 4294901760
  %v819 = vsub.f32 %v511, %v818
  %v820 = vand.u32 %v819, 4294901760
  %821 = vmatpush1.msra.mxu0 %v820
  %822 = vmatprep.subr.mxu0 0.0
  %823 = vmatpush1.msra.mxu0 0.0
  %824 = vmatprep.subr.mxu0 0.0
  %825 = vmatpush1.msra.mxu0 0.0
  %826 = vmatprep.subr.mxu0 0.0
  %827 = vmatpush1.msra.mxu0 0.0
  %828 = vmatprep.subr.mxu0 0.0
  %829 = vmatpush1.msra.mxu0 0.0
  %830 = vmatprep.subr.mxu0 0.0
  %831 = vmatpush1.msra.mxu0 0.0
  %832 = vmatprep.subr.mxu0 0.0
  %833 = vmatpush1.msra.mxu0 0.0
  %834 = vmatprep.subr.mxu0 0.0
  %835 = vmatpush1.msra.mxu0 0.0
  %836 = vmatprep.subr.mxu0 0.0
  %837 = vmatpush1.msra.mxu0 0.0
  %838 = vmatprep.subr.mxu0 0.0
  %839 = vmatpush1.msra.mxu0 0.0
  %840 = vmatprep.subr.mxu0 0.0
  %841 = vmatpush1.msra.mxu0 0.0
  %842 = vmatprep.subr.mxu0 0.0
  %843 = vmatpush1.msra.mxu0 0.0
  %844 = vmatprep.subr.mxu0 0.0
  %845 = vmatpush1.msra.mxu0 0.0
  %846 = vmatprep.subr.mxu0 0.0
  %847 = vmatpush1.msra.mxu0 0.0
  %848 = vmatprep.subr.mxu0 0.0
  %849 = vmatpush1.msra.mxu0 0.0
  %850 = vmatprep.subr.mxu0 0.0
  %851 = vmatpush1.msra.mxu0 0.0
  %852 = vmatprep.subr.mxu0 0.0
  %853 = vmatpush1.msra.mxu0 0.0
  %854 = vmatprep.subr.mxu0 0.0
  %855 = vmatpush1.msra.mxu0 0.0
  %856 = vmatprep.subr.mxu0 0.0
  %857 = vmatpush1.msra.mxu0 0.0
  %858 = vmatprep.subr.mxu0 0.0
  %859 = vmatpush1.msra.mxu0 0.0
  %860 = vmatprep.subr.mxu0 0.0
  %861 = vmatpush1.msra.mxu0 0.0
  %862 = vmatprep.subr.mxu0 0.0
  %863 = vmatpush1.msra.mxu0 0.0
  %864 = vmatprep.subr.mxu0 0.0
  %865 = vmatpush1.msra.mxu0 0.0
  %866 = vmatprep.subr.mxu0 0.0
  %867 = vmatpush1.msra.mxu0 0.0
  %868 = vmatprep.subr.mxu0 0.0
  %869 = vmatpush1.msra.mxu0 0.0
  %870 = vmatprep.subr.mxu0 0.0
  %871 = vmatpush1.msra.mxu0 0.0
  %872 = vmatprep.subr.mxu0 0.0
  %873 = vmatpush1.msra.mxu0 0.0
  %874 = vmatprep.subr.mxu0 0.0
  %875 = vmatpush1.msra.mxu0 0.0
  %876 = vmatprep.subr.mxu0 0.0
  %877 = vmatpush1.msra.mxu0 0.0
  %878 = vmatprep.subr.mxu0 0.0
  %879 = vmatpush1.msra.mxu0 0.0
  %880 = vmatprep.subr.mxu0 0.0
  %881 = vmatpush1.msra.mxu0 0.0
  %882 = vmatprep.subr.mxu0 0.0
  %883 = vmatpush1.msra.mxu0 0.0
  %884 = vmatprep.mubr.f32.mxu0 0.0
  %v885 = vand.u32 %v515, 4294901760
  %886 = vmatmul.mubr.f32.gmra.mrb[0].mxu0 %v885
  %v887 = vpop.f32.mrb[0].mxu0
  %v888 = vadd.f32 %v814, %v887
  %v889 = vpop.f32.mrb[0].mxu0
  %890 = vdwg.mxu0
  %891 = vmatprep.subr.mxu0 0.0
  %v892 = vand.u32 %v511, 4294901760
  %893 = vmatpush1.msra.mxu0 %v892
  %894 = vmatprep.subr.mxu0 0.0
  %895 = vmatpush1.msra.mxu0 0.0
  %896 = vmatprep.subr.mxu0 0.0
  %897 = vmatpush1.msra.mxu0 0.0
  %898 = vmatprep.subr.mxu0 0.0
  %899 = vmatpush1.msra.mxu0 0.0
  %900 = vmatprep.subr.mxu0 0.0
  %901 = vmatpush1.msra.mxu0 0.0
  %902 = vmatprep.subr.mxu0 0.0
  %903 = vmatpush1.msra.mxu0 0.0
  %904 = vmatprep.subr.mxu0 0.0
  %905 = vmatpush1.msra.mxu0 0.0
  %906 = vmatprep.subr.mxu0 0.0
  %907 = vmatpush1.msra.mxu0 0.0
  %908 = vmatprep.subr.mxu0 0.0
  %909 = vmatpush1.msra.mxu0 0.0
  %910 = vmatprep.subr.mxu0 0.0
  %911 = vmatpush1.msra.mxu0 0.0
  %912 = vmatprep.subr.mxu0 0.0
  %913 = vmatpush1.msra.mxu0 0.0
  %914 = vmatprep.subr.mxu0 0.0
  %915 = vmatpush1.msra.mxu0 0.0
  %916 = vmatprep.subr.mxu0 0.0
  %917 = vmatpush1.msra.mxu0 0.0
  %918 = vmatprep.subr.mxu0 0.0
  %919 = vmatpush1.msra.mxu0 0.0
  %920 = vmatprep.subr.mxu0 0.0
  %921 = vmatpush1.msra.mxu0 0.0
  %922 = vmatprep.subr.mxu0 0.0
  %923 = vmatpush1.msra.mxu0 0.0
  %924 = vmatprep.subr.mxu0 0.0
  %925 = vmatpush1.msra.mxu0 0.0
  %926 = vmatprep.subr.mxu0 0.0
  %927 = vmatpush1.msra.mxu0 0.0
  %928 = vmatprep.subr.mxu0 0.0
  %929 = vmatpush1.msra.mxu0 0.0
  %930 = vmatprep.subr.mxu0 0.0
  %931 = vmatpush1.msra.mxu0 0.0
  %932 = vmatprep.subr.mxu0 0.0
  %933 = vmatpush1.msra.mxu0 0.0
  %934 = vmatprep.subr.mxu0 0.0
  %935 = vmatpush1.msra.mxu0 0.0
  %936 = vmatprep.subr.mxu0 0.0
  %937 = vmatpush1.msra.mxu0 0.0
  %938 = vmatprep.subr.mxu0 0.0
  %939 = vmatpush1.msra.mxu0 0.0
  %940 = vmatprep.subr.mxu0 0.0
  %941 = vmatpush1.msra.mxu0 0.0
  %942 = vmatprep.subr.mxu0 0.0
  %943 = vmatpush1.msra.mxu0 0.0
  %944 = vmatprep.subr.mxu0 0.0
  %945 = vmatpush1.msra.mxu0 0.0
  %946 = vmatprep.subr.mxu0 0.0
  %947 = vmatpush1.msra.mxu0 0.0
  %948 = vmatprep.subr.mxu0 0.0
  %949 = vmatpush1.msra.mxu0 0.0
  %950 = vmatprep.subr.mxu0 0.0
  %951 = vmatpush1.msra.mxu0 0.0
  %952 = vmatprep.subr.mxu0 0.0
  %953 = vmatpush1.msra.mxu0 0.0
  %954 = vmatprep.subr.mxu0 0.0
  %955 = vmatpush1.msra.mxu0 0.0
  %956 = vmatprep.mubr.f32.mxu0 0.0
  %v957 = vand.u32 %v515, 4294901760
  %958 = vmatmul.mubr.f32.gmra.mrb[0].mxu0 %v957
  %v959 = vpop.f32.mrb[0].mxu0
  %v960 = vadd.f32 %v888, %v959
  %v961 = vpop.f32.mrb[0].mxu0
  %962 = vdwg.mxu0
  %v963 = vadd.f32 %v512, %v960
  %vm964 = vcmask 15360
  %965 = vst.msk [vmem:[#allocation3] sm:$0xff] %vm964, %v963
  // Predicated region
  $region14: #{tpu_custom_call.1} parent=0 // pred_check
    %p966 = pneg %p11
  $region15: #{tpu_custom_call.1} parent=0 // pred_check_branch
    %968 = sbr.rel (%p966) target = $region17
  $region16: #{tpu_custom_call.1} parent=0 // pred_region
    %v969 = vld [vmem:[%s0] sm:$0xff]
    %vm970 = vcmp.gt.f32.partialorder %v969, 0.5
    %v971 = vld [vmem:[#allocation3] sm:$0xff]
    %973 = vrot.lane.b32.xlu0 %v971, 127
    %v974 = vpop.permute.xlu0 %973
    %v976 = vsel %vm970, %v971, %v974
    %v977 = vadd.f32 %v971, %v974
    %v978 = vrcp.pop %v977
    %v979 = vmul.f32 %v976, %v978
    %v980 = vadd.f32 %v979, 1e-05
    %v981 = vlog2.pop %v980
    %v982 = vmul.f32 %v981, 0.6931472
    %v983 = vmul.f32 %v982, -0.25
    %vm984 = vcmask 7168
    %985 = vst.msk [vmem:[%s2] sm:$0xff] %vm984, %v983
  $region17: #{tpu_custom_call.1} parent=0 // pred_fallthru
    _
  // Predicated region
  $region18: #{tpu_custom_call.1} parent=0 // pred_check
    _
  $region19: #{tpu_custom_call.1} parent=0 // pred_check_branch
    %987 = sbr.rel (0) target = $region21
  $region20: #{tpu_custom_call.1} parent=0 // pred_region
    _
  $region21: #{tpu_custom_call.1} parent=0 // pred_fallthru
    _
  // Predicated region
  $region22: #{tpu_custom_call.1} parent=0 // pred_check
    _
  $region23: #{tpu_custom_call.1} parent=0 // pred_check_branch
    %989 = sbr.rel (0) target = $region25
  $region24: #{tpu_custom_call.1} parent=0 // pred_region
    _
  $region25: #{tpu_custom_call.1} parent=0 // pred_fallthru
    _

</llo_original>
